<compile_context>
chip_gen: v5e
topology: v5e:2x2
jax: 0.10.0
libtpu: 0.0.40
codegen_flags: <defaults>
</compile_context>

<pallas_src>
import jax
import jax.numpy as jnp
from jax import lax
from jax.experimental import pallas as pl
from jax.experimental.pallas import tpu as pltpu


_NEG_INF = -1e30  # finite "masked" value: avoids NaN even if a row has len<=0


def _attn_general_kernel(q_ref, enc_ref, len_ref, w_ref, bias_ref, o_ref):
    """One grid step processes TB batch rows.

    q_ref   : [TB, Q]      (compute dtype)
    enc_ref : [TB, S, H]   (compute dtype)
    len_ref : [TB, 1]      int32 (valid lengths = tgt_index + 1)
    w_ref   : [Q, H]       (compute dtype)
    bias_ref: [1, Q]       (compute dtype)
    o_ref   : [TB, 1, H]   float32
    """
    enc = enc_ref[...]                                           # [TB, S, H]
    lens = len_ref[...]                                          # [TB, 1] int32
    TB, S, _ = enc.shape

    # v[b] = query[b] @ W   (no transpose needed; MXU, f32 accumulate)
    v = jnp.dot(q_ref[...], w_ref[...],
                preferred_element_type=jnp.float32)              # [TB, H] f32

    # c[b] = bias . query[b]   (scalar per row, f32)
    q32 = q_ref[...].astype(jnp.float32)
    b32 = bias_ref[...].astype(jnp.float32)
    c = jnp.sum(q32 * b32, axis=-1, keepdims=True)               # [TB, 1]

    # energies[b, s] = enc[b, s] . v[b] + c[b]   -> lane-major [TB, S]
    energies = jnp.sum(enc.astype(jnp.float32) * v[:, None, :],
                       axis=-1) + c                              # [TB, S]

    # Mask positions >= this_len and softmax over the valid prefix (f32).
    pos = lax.broadcasted_iota(jnp.int32, (TB, S), 1)
    energies = jnp.where(pos < lens, energies, _NEG_INF)
    m = jnp.max(energies, axis=-1, keepdims=True)                # [TB, 1]
    p = jnp.exp(energies - m)                                    # masked -> 0
    denom = jnp.sum(p, axis=-1, keepdims=True)                   # [TB, 1]
    weights = p * pl.reciprocal(denom, approx=True)              # [TB, S]

    # context[b] = weights[b] @ enc[b]  ->  [TB, 1, H]   (MXU batched matmul)
    ctx = jnp.einsum('bls,bsh->blh',
                     weights[:, None, :].astype(enc.dtype), enc,
                     preferred_element_type=jnp.float32)
    o_ref[...] = ctx.astype(o_ref.dtype)


def attn_general(query, encoder_outputs, tgt_index, w, bias,
                 *, block_b=8, compute_dtype=jnp.float32):
    """query [B,Q], encoder_outputs [B,S,H], tgt_index [B] int, w [Q,H],
    bias [1,Q]  ->  context [B,H] float32."""
    B, Q = query.shape
    _, S, H = encoder_outputs.shape

    TB = min(block_b, B)
    n_blocks = pl.cdiv(B, TB)
    Bp = n_blocks * TB

    tgt_index = tgt_index.astype(jnp.int32)
    if Bp != B:
        pad = Bp - B
        query = jnp.pad(query, ((0, pad), (0, 0)))
        encoder_outputs = jnp.pad(encoder_outputs, ((0, pad), (0, 0), (0, 0)))
        tgt_index = jnp.pad(tgt_index, (0, pad))   # padded rows: len=1, enc=0

    lens = (tgt_index + 1).reshape(Bp, 1)

    if compute_dtype != jnp.float32:
        # bf16 MXU inputs + halved enc HBM traffic (v6e/v7x bf16-native MXU);
        # softmax math stays in f32 inside the kernel (v5e has no bf16 VPU/EUP).
        query = query.astype(compute_dtype)
        encoder_outputs = encoder_outputs.astype(compute_dtype)
        w = w.astype(compute_dtype)
        bias = bias.astype(compute_dtype)

    out = pl.pallas_call(
        _attn_general_kernel,
        out_shape=jax.ShapeDtypeStruct((Bp, 1, H), jnp.float32),
        grid=(n_blocks,),
        in_specs=[
            pl.BlockSpec((TB, Q), lambda bb: (bb, 0)),        # query rows
            pl.BlockSpec((TB, S, H), lambda bb: (bb, 0, 0)),  # encoder rows
            pl.BlockSpec((TB, 1), lambda bb: (bb, 0)),        # valid lengths
            pl.BlockSpec((Q, H), lambda bb: (0, 0)),          # W (shared)
            pl.BlockSpec((1, Q), lambda bb: (0, 0)),          # bias (shared)
        ],
        out_specs=pl.BlockSpec((TB, 1, H), lambda bb: (bb, 0, 0)),
        compiler_params=pltpu.CompilerParams(
            dimension_semantics=("parallel",)),               # v7x: 2 TCs
    )(query, encoder_outputs, lens, w, bias)

    return out.reshape(Bp, H)[:B]


def _reference(query, encoder_outputs, tgt_index, w, bias):
    """Pure-JAX reference mirroring the PyTorch loop (method='general')."""
    B, S, H = encoder_outputs.shape
    outs = []
    for b in range(B):
        L = int(tgt_index[b]) + 1
        enc = encoder_outputs[b, :L]                       # [L, H]
        proj = enc @ w.T + bias[0]                         # [L, Q]
        e = proj @ query[b]                                # [L]
        wgt = jax.nn.softmax(e, axis=0)                    # [L]
        outs.append(wgt @ enc)                             # [H]
    return jnp.stack(outs)


if __name__ == "__main__":
    # Small deterministic setup consistent with the module:
    #   query_size Q = 16, hidden_size H = 32, batch B = 2, seq S = 8
    B, S, Q, H = 2, 8, 16, 32

    key = jax.random.PRNGKey(0)
    k1, k2, k3, k4 = jax.random.split(key, 4)

    query = jax.random.normal(k1, (B, Q), dtype=jnp.float32)
    encoder_outputs = jax.random.normal(k2, (B, S, H), dtype=jnp.float32)
    tgt_index = jnp.array([3, 6], dtype=jnp.int32)         # valid lens 4 and 7

    # nn.Linear(hidden_size, query_size): weight [Q, H], bias [Q]
    bound = 1.0 / (H ** 0.5)
    w = jax.random.uniform(k3, (Q, H), minval=-bound, maxval=bound,
                           dtype=jnp.float32)
    bias = jax.random.uniform(k4, (1, Q), minval=-bound, maxval=bound,
                              dtype=jnp.float32)

    ctx = attn_general(query, encoder_outputs, tgt_index, w, bias)
    jax.block_until_ready(ctx)

    ref = _reference(query, encoder_outputs, tgt_index, w, bias)
    assert ctx.shape == (B, H)
    # approx=True reciprocal (EUP) loosens tolerance vs the exact 1e-5 check.
    err = float(jnp.max(jnp.abs(ctx - ref)))
    assert err < 5e-3, f"mismatch vs reference (max abs err {err})"

    # TODO(synk): 'dot' and 'concat' score variants not implemented; only
    # method='general' (Linear projection + dot + masked softmax) is kernelized.
    # TODO(synk): for large S, add an S-tile grid axis (reduction-last,
    # online-softmax accumulator) and use scalar-prefetched lengths to skip
    # fully-masked tiles; unnecessary at the toy S=8.
    print("KERNEL_OK")
</pallas_src>

<mosaic_0001>
module attributes {stable_mosaic.version = 11 : i64} {
  func.func @_attn_general_kernel(%arg0: i32, %arg1: memref<2x16xf32, #tpu.memory_space<vmem>>, %arg2: memref<2x8x32xf32, #tpu.memory_space<vmem>>, %arg3: memref<2x1xi32, #tpu.memory_space<vmem>>, %arg4: memref<16x32xf32, #tpu.memory_space<vmem>>, %arg5: memref<1x16xf32, #tpu.memory_space<vmem>>, %arg6: memref<2x1x32xf32, #tpu.memory_space<vmem>>) attributes {dimension_semantics = [#tpu.dimension_semantics<parallel>], iteration_bounds = array<i64: 1>, scalar_prefetch = 0 : i64, scratch_operands = 0 : i64, tpu.core_type = #tpu.core_type<tc>, window_params = [{transform_indices = @transform_0, window_bounds = array<i64: 2, 16>}, {transform_indices = @transform_1, window_bounds = array<i64: 2, 8, 32>}, {transform_indices = @transform_2, window_bounds = array<i64: 2, 1>}, {pipeline_mode = #tpu.pipeline_mode<synchronous>, transform_indices = @transform_3, window_bounds = array<i64: 16, 32>}, {pipeline_mode = #tpu.pipeline_mode<synchronous>, transform_indices = @transform_4, window_bounds = array<i64: 1, 16>}, {transform_indices = @transform_5, window_bounds = array<i64: 2, 1, 32>}]} {
    %c0 = arith.constant 0 : index
    %c0_0 = arith.constant 0 : index
    %c0_1 = arith.constant 0 : index
    %0 = vector.load %arg2[%c0, %c0_0, %c0_1] : memref<2x8x32xf32, #tpu.memory_space<vmem>>, vector<2x8x32xf32>
    %c0_2 = arith.constant 0 : index
    %c0_3 = arith.constant 0 : index
    %1 = vector.load %arg3[%c0_2, %c0_3] : memref<2x1xi32, #tpu.memory_space<vmem>>, vector<2x1xi32>
    %c0_4 = arith.constant 0 : index
    %c0_5 = arith.constant 0 : index
    %2 = vector.load %arg1[%c0_4, %c0_5] : memref<2x16xf32, #tpu.memory_space<vmem>>, vector<2x16xf32>
    %c0_6 = arith.constant 0 : index
    %c0_7 = arith.constant 0 : index
    %3 = vector.load %arg4[%c0_6, %c0_7] : memref<16x32xf32, #tpu.memory_space<vmem>>, vector<16x32xf32>
    %cst = arith.constant dense<0.000000e+00> : vector<2x32xf32>
    %4 = tpu.matmul %2, %3, %cst {dimension_numbers = #tpu.dot_dimension_numbers<[1], [0], [0], [1], [0, 0, 1, 1], [], []>} : vector<2x16xf32>, vector<16x32xf32>, vector<2x32xf32> -> vector<2x32xf32>
    %c0_8 = arith.constant 0 : index
    %c0_9 = arith.constant 0 : index
    %5 = vector.load %arg1[%c0_8, %c0_9] : memref<2x16xf32, #tpu.memory_space<vmem>>, vector<2x16xf32>
    %c0_10 = arith.constant 0 : index
    %c0_11 = arith.constant 0 : index
    %6 = vector.load %arg5[%c0_10, %c0_11] : memref<1x16xf32, #tpu.memory_space<vmem>>, vector<1x16xf32>
    %7 = vector.broadcast %6 : vector<1x16xf32> to vector<2x16xf32>
    %8 = arith.mulf %5, %7 : vector<2x16xf32>
    %cst_12 = arith.constant dense<0.000000e+00> : vector<2xf32>
    %9 = vector.multi_reduction <add>, %8, %cst_12 [1] : vector<2x16xf32> to vector<2xf32>
    %10 = vector.shape_cast %9 : vector<2xf32> to vector<2x1xf32>
    %11 = vector.shape_cast %4 : vector<2x32xf32> to vector<2x1x32xf32>
    %12 = vector.broadcast %11 : vector<2x1x32xf32> to vector<2x8x32xf32>
    %13 = arith.mulf %0, %12 : vector<2x8x32xf32>
    %cst_13 = arith.constant dense<0.000000e+00> : vector<2x8xf32>
    %14 = vector.multi_reduction <add>, %13, %cst_13 [2] : vector<2x8x32xf32> to vector<2x8xf32>
    %15 = vector.broadcast %10 : vector<2x1xf32> to vector<2x8xf32>
    %16 = arith.addf %14, %15 : vector<2x8xf32>
    %17 = tpu.iota {dimensions = array<i32: 1>} : vector<2x8xi32>
    %18 = vector.broadcast %1 : vector<2x1xi32> to vector<2x8xi32>
    %19 = arith.cmpi slt, %17, %18 : vector<2x8xi32>
    %cst_14 = arith.constant -1.000000e+30 : f32
    %20 = vector.broadcast %cst_14 : f32 to vector<2x8xf32>
    %21 = arith.select %19, %16, %20 : vector<2x8xi1>, vector<2x8xf32>
    %cst_15 = arith.constant dense<0xFF800000> : vector<2xf32>
    %22 = vector.multi_reduction <maximumf>, %21, %cst_15 [1] : vector<2x8xf32> to vector<2xf32>
    %23 = vector.shape_cast %22 : vector<2xf32> to vector<2x1xf32>
    %24 = vector.broadcast %23 : vector<2x1xf32> to vector<2x8xf32>
    %25 = arith.subf %21, %24 : vector<2x8xf32>
    %26 = math.exp %25 : vector<2x8xf32>
    %cst_16 = arith.constant dense<0.000000e+00> : vector<2xf32>
    %27 = vector.multi_reduction <add>, %26, %cst_16 [1] : vector<2x8xf32> to vector<2xf32>
    %28 = vector.shape_cast %27 : vector<2xf32> to vector<2x1xf32>
    %29 = tpu.reciprocal %28 {approx = true} : vector<2x1xf32> -> vector<2x1xf32>
    %30 = vector.broadcast %29 : vector<2x1xf32> to vector<2x8xf32>
    %31 = arith.mulf %26, %30 : vector<2x8xf32>
    %32 = vector.shape_cast %31 : vector<2x8xf32> to vector<2x1x8xf32>
    "tpu.trace_start"() <{level = 10 : i32, message = "bls,bsh->blh"}> : () -> ()
    %cst_17 = arith.constant dense<0.000000e+00> : vector<2x1x32xf32>
    %33 = tpu.matmul %32, %0, %cst_17 {dimension_numbers = #tpu.dot_dimension_numbers<[2], [1], [1], [2], [0, 0, 0, 1, 1, 2], [0], [0]>} : vector<2x1x8xf32>, vector<2x8x32xf32>, vector<2x1x32xf32> -> vector<2x1x32xf32>
    "tpu.trace_stop"() : () -> ()
    %c0_18 = arith.constant 0 : index
    %c0_19 = arith.constant 0 : index
    %c0_20 = arith.constant 0 : index
    %34 = vector.load %arg6[%c0_18, %c0_19, %c0_20] : memref<2x1x32xf32, #tpu.memory_space<vmem>>, vector<2x1x32xf32>
    tpu.vector_store %arg6[%c0_18, %c0_19, %c0_20], %33 {strides = array<i32>} : memref<2x1x32xf32, #tpu.memory_space<vmem>>, vector<2x1x32xf32>,
    return
  }
  func.func @transform_0(%arg0: i32) -> (i32, i32) {
    %c0_i32 = arith.constant 0 : i32
    %c0_i32_0 = arith.constant 0 : i32
    return %arg0, %c0_i32 : i32, i32
  }
  func.func @transform_1(%arg0: i32) -> (i32, i32, i32) {
    %c0_i32 = arith.constant 0 : i32
    %c0_i32_0 = arith.constant 0 : i32
    %c0_i32_1 = arith.constant 0 : i32
    return %arg0, %c0_i32, %c0_i32_0 : i32, i32, i32
  }
  func.func @transform_2(%arg0: i32) -> (i32, i32) {
    %c0_i32 = arith.constant 0 : i32
    %c0_i32_0 = arith.constant 0 : i32
    return %arg0, %c0_i32 : i32, i32
  }
  func.func @transform_3(%arg0: i32) -> (i32, i32) {
    %c0_i32 = arith.constant 0 : i32
    %c0_i32_0 = arith.constant 0 : i32
    %c0_i32_1 = arith.constant 0 : i32
    return %c0_i32, %c0_i32_0 : i32, i32
  }
  func.func @transform_4(%arg0: i32) -> (i32, i32) {
    %c0_i32 = arith.constant 0 : i32
    %c0_i32_0 = arith.constant 0 : i32
    %c0_i32_1 = arith.constant 0 : i32
    return %c0_i32, %c0_i32_0 : i32, i32
  }
  func.func @transform_5(%arg0: i32) -> (i32, i32, i32) {
    %c0_i32 = arith.constant 0 : i32
    %c0_i32_0 = arith.constant 0 : i32
    %c0_i32_1 = arith.constant 0 : i32
    return %arg0, %c0_i32, %c0_i32_0 : i32, i32, i32
  }
}

</mosaic_0001>

<llo_original>
// kernel: tpu_custom_call.1
$region0: #{tpu_custom_call.1}
  #allocation0 [shape = 'u32[]', space=smem, size = 0x4, offset = 0x4, fixed_abs, tag = 'smem constant byte address 0x4 - core index']
  #allocation1 [shape = 'u32[72,128]{1,0:T(1,128)}', space=vmem, size = 0x9000, scoped, tag = 'internal scratch']
  %s0 = inlined_call_operand.vmem [shape: f32[2,16], index: 0, kind: input, shape index: {}]
  %s1 = inlined_call_operand.hbm [shape: f32[2,8,32], index: 1, kind: input, shape index: {}]
  %s2 = inlined_call_operand.vmem [shape: s32[2,1], index: 2, kind: input, shape index: {}]
  %s3 = inlined_call_operand.hbm [shape: f32[16,32], index: 3, kind: input, shape index: {}]
  %s4 = inlined_call_operand.vmem [shape: f32[1,16], index: 4, kind: input, shape index: {}]
  %s5 = inlined_call_operand.hbm [shape: f32[2,1,32], index: 5, kind: output, shape index: {}]
  %s6 = sld [smem:[#allocation0]]
  $region38: #{tpu_custom_call.1} parent=0
    _
  %s8 = ssub.s32 1, %s6
  %s9 = scalar_select 0, %s8, %s6
  $region1: #{tpu_custom_call.1} parent=0
    #allocation2 [shape = 'u8[8192]{0}', space=vmem, size = 0x2000, scoped, tag = 'input window, operand 1, single buffered']
    #allocation3 [shape = 's32[1]{0}', space=sflag, size = 0x4, scoped, tag = 'scoped memory for tpu_custom_call.1']
    #allocation4 [shape = 's32[1]{0}', space=sflag, size = 0x4, scoped, tag = 'scoped memory for tpu_custom_call.1']
    #allocation5 [shape = 'u8[8192]{0}', space=vmem, size = 0x2000, scoped, tag = 'input window, operand 3, single buffered']
    #allocation6 [shape = 's32[1]{0}', space=sflag, size = 0x4, scoped, tag = 'scoped memory for tpu_custom_call.1']
    #allocation7 [shape = 'u8[1024]{0}', space=vmem, size = 0x400, scoped, tag = 'output window, operand 0, single buffered']
    %10 = vsyncpa [#allocation3], 0
    %11 = vsyncpa [#allocation6], 0
    %12 = vsyncpa [#allocation4], 0
    // Predicated region
    $region2: #{tpu_custom_call.1} parent=1 // pred_check
      _
    $region3: #{tpu_custom_call.1} parent=1 // pred_check_branch
      %14 = sbr.rel (0) target = $region5
    $region4: #{tpu_custom_call.1} parent=1 // pred_region
      _
    $region5: #{tpu_custom_call.1} parent=1 // pred_fallthru
      _
    // Predicated region
    $region6: #{tpu_custom_call.1} parent=1 // pred_check
      _
    $region7: #{tpu_custom_call.1} parent=1 // pred_check_branch
      %16 = sbr.rel (0) target = $region9
    $region8: #{tpu_custom_call.1} parent=1 // pred_region
      %18 = vsyncadd [#allocation3], 0
      %s19 = sshll.u32 %s1, 4
      %s20 = int_to_ptr.hbm [resolvable:$true] %s19
      %s21 = sshll.u32 [#allocation2], 4
      %s22 = int_to_ptr.vmem [resolvable:$true] %s21
      %27 = dma.hbm_to_vmem [thread:$0]  %s20, 256, %s22, [#allocation3], 128, 128, 8
    $region9: #{tpu_custom_call.1} parent=1 // pred_fallthru
      _
    // Predicated region
    $region10: #{tpu_custom_call.1} parent=1 // pred_check
      _
    $region11: #{tpu_custom_call.1} parent=1 // pred_check_branch
      %29 = sbr.rel (0) target = $region13
    $region12: #{tpu_custom_call.1} parent=1 // pred_region
      _
    $region13: #{tpu_custom_call.1} parent=1 // pred_fallthru
      _
    // Predicated region
    $region14: #{tpu_custom_call.1} parent=1 // pred_check
      _
    $region15: #{tpu_custom_call.1} parent=1 // pred_check_branch
      %31 = sbr.rel (0) target = $region17
    $region16: #{tpu_custom_call.1} parent=1 // pred_region
      %33 = vsyncadd [#allocation6], 0
      %s34 = sshll.u32 %s3, 4
      %s35 = int_to_ptr.hbm [resolvable:$true] %s34
      %s36 = sshll.u32 [#allocation5], 4
      %s37 = int_to_ptr.vmem [resolvable:$true] %s36
      %42 = dma.hbm_to_vmem [thread:$0]  %s35, 256, %s37, [#allocation6], 128, 128, 8
    $region17: #{tpu_custom_call.1} parent=1 // pred_fallthru
      _
    // Predicated region
    $region18: #{tpu_custom_call.1} parent=1 // pred_check
      _
    $region19: #{tpu_custom_call.1} parent=1 // pred_check_branch
      %44 = sbr.rel (0) target = $region21
    $region20: #{tpu_custom_call.1} parent=1 // pred_region
      _
    $region21: #{tpu_custom_call.1} parent=1 // pred_fallthru
      _
    // Predicated region
    $region22: #{tpu_custom_call.1} parent=1 // pred_check
      _
    $region23: #{tpu_custom_call.1} parent=1 // pred_check_branch
      %46 = sbr.rel (0) target = $region25
    $region24: #{tpu_custom_call.1} parent=1 // pred_region
      %48 = dma.done [#allocation3], 256
    $region25: #{tpu_custom_call.1} parent=1 // pred_fallthru
      _
    // Predicated region
    $region26: #{tpu_custom_call.1} parent=1 // pred_check
      _
    $region27: #{tpu_custom_call.1} parent=1 // pred_check_branch
      %50 = sbr.rel (0) target = $region29
    $region28: #{tpu_custom_call.1} parent=1 // pred_region
      %52 = dma.done [#allocation6], 256
    $region29: #{tpu_custom_call.1} parent=1 // pred_fallthru
      _
    %v53 = vld [vmem:[#allocation2] sm:$0xff]
    %v54 = vld [vmem:[#allocation2 + $0x8] sm:$0xff]
    %v55 = vld [vmem:[%s2] sm:$0x3]
    %v56 = vld [vmem:[%s0] sm:$0x3]
    %v57 = vld [vmem:[#allocation5] sm:$0xff]
    %v58 = vld [vmem:[#allocation5 + $0x8] sm:$0xff]
    %vm59 = vcmask 130048
    %v61 = vsel %vm59, %v56, 0
    %63 = vmatpush.msra.mxu0 0.0
    %64 = vmatpush.msra.mxu0 0.0
    %65 = vmatpush.msra.mxu0 0.0
    %66 = vmatpush.msra.mxu0 0.0
    %67 = vmatpush.msra.mxu0 0.0
    %68 = vmatpush.msra.mxu0 0.0
    %69 = vmatpush.msra.mxu0 0.0
    %70 = vmatpush.msra.mxu0 0.0
    %71 = vmatpush.msra.mxu0 0.0
    %72 = vmatpush.msra.mxu0 0.0
    %73 = vmatpush.msra.mxu0 0.0
    %74 = vmatpush.msra.mxu0 0.0
    %75 = vmatpush.msra.mxu0 0.0
    %76 = vmatpush.msra.mxu0 0.0
    %77 = vmatpush.msra.mxu0 %v58
    %78 = vmatpush.msra.mxu0 %v57
    %79 = vmatmul.f32.gmra.mxu0 %v61
    %v80 = vpop.f32.mrf.mxu0
    %v81 = vadd.f32 0.0, %v80
    %82 = vdwg.mxu0
    %v83 = vld [vmem:[%s4] sm:$0x1]
    %v85 = vperm.slane %v83, 0
    %v87 = vmul.f32 %v56, %v85
    %vm88 = vcmask 123904
    %v89 = vsel %vm88, %v87, 0.0
    %90 = vadd.xlane.f32.xlu0 %v89
    %v91 = vpop.xlane.xlu0 %90
    %v93 = vrot.slane %v81, 1
    %v94 = vperm.slane %v81, 0
    %v95 = vperm.slane %v93, 0
    %v98 = vmul.f32 %v53, %v94
    %v99 = vmul.f32 %v54, %v95
    %vm100 = vcmask 261120
    %v101 = vsel %vm100, %v98, 0.0
    %102 = vadd.xlane.f32.xlu0 %v101
    %v103 = vpop.xlane.xlu0 %102
    %v104 = vsel %vm100, %v99, 0.0
    %105 = vadd.xlane.f32.xlu0 %v104
    %v106 = vpop.xlane.xlu0 %105
    %v108 = vperm.slane %v91, 0
    %v109 = vperm.slane %v91, 1
    %v112 = vadd.f32 %v103, %v108
    %v113 = vadd.f32 %v106, %v109
    %v114 = vlaneseq
    %v115 = vand.u32 %v114, 127
    %116 = vset.pattern.permute.xlu0 0
    %117 = vperm.xlu0 %116, %v55
    %v118 = vpop.permute.xlu0 %117
    %vm119 = vcmp.lt.s32.totalorder %v115, %v118
    %122 = vset.pattern.permute.xlu0 0
    %123 = vperm.xlu0 %122, %v112
    %v124 = vpop.permute.xlu0 %123
    %125 = vset.pattern.permute.xlu0 0
    %126 = vperm.xlu0 %125, %v113
    %v127 = vpop.permute.xlu0 %126
    %v128 = vperm.slane %v124, %v115
    %v129 = vperm.slane %v127, %v115
    %vm130 = vcmask 1041409
    %v131 = vsel %vm130, %v129, %v128
    %v133 = vsel %vm119, %v131, -1e+30
    %vm134 = vcmask 58368
    %v135 = vsel %vm134, %v133, -inf
    %136 = vmax.xlane.f32.xlu0 %v135
    %v137 = vpop.xlane.xlu0 %136
    %v138 = vsub.f32 %v133, %v137
    %v139 = vmul.f32 %v138, 1.442695
    %v140 = vpow.pop %v139
    %v141 = vsel %vm134, %v140, 0.0
    %142 = vadd.xlane.f32.xlu0 %v141
    %v143 = vpop.xlane.xlu0 %142
    %v144 = vrcp.pop %v143
    %v145 = vmul.f32 %v140, %v144
    %v147 = vrot.slane %v145, 1
    %vm148 = vcmask 64512
    %v149 = vsel %vm148, %v145, 0
    %151 = vmatpush.msra.mxu0 0.0
    %152 = vmatpush.msra.mxu0 0.0
    %153 = vmatpush.msra.mxu0 0.0
    %154 = vmatpush.msra.mxu0 0.0
    %155 = vmatpush.msra.mxu0 0.0
    %156 = vmatpush.msra.mxu0 0.0
    %157 = vmatpush.msra.mxu0 0.0
    %158 = vmatpush.msra.mxu0 0.0
    %159 = vmatpush.msra.mxu0 0.0
    %160 = vmatpush.msra.mxu0 0.0
    %161 = vmatpush.msra.mxu0 0.0
    %162 = vmatpush.msra.mxu0 0.0
    %163 = vmatpush.msra.mxu0 0.0
    %164 = vmatpush.msra.mxu0 0.0
    %165 = vmatpush.msra.mxu0 0.0
    %166 = vmatpush.msra.mxu0 %v53
    %167 = vmatmul.f32.gmra.mxu0 %v149
    %v168 = vpop.f32.mrf.mxu0
    %v169 = vadd.f32 0.0, %v168
    %170 = vdwg.mxu0
    %v171 = vsel %vm148, %v147, 0
    %173 = vmatpush.msra.mxu0 0.0
    %174 = vmatpush.msra.mxu0 0.0
    %175 = vmatpush.msra.mxu0 0.0
    %176 = vmatpush.msra.mxu0 0.0
    %177 = vmatpush.msra.mxu0 0.0
    %178 = vmatpush.msra.mxu0 0.0
    %179 = vmatpush.msra.mxu0 0.0
    %180 = vmatpush.msra.mxu0 0.0
    %181 = vmatpush.msra.mxu0 0.0
    %182 = vmatpush.msra.mxu0 0.0
    %183 = vmatpush.msra.mxu0 0.0
    %184 = vmatpush.msra.mxu0 0.0
    %185 = vmatpush.msra.mxu0 0.0
    %186 = vmatpush.msra.mxu0 0.0
    %187 = vmatpush.msra.mxu0 0.0
    %188 = vmatpush.msra.mxu0 %v54
    %189 = vmatmul.f32.gmra.mxu0 %v171
    %v190 = vpop.f32.mrf.mxu0
    %v191 = vadd.f32 0.0, %v190
    %192 = vdwg.mxu0
    %vm193 = vcmask 253952
    %194 = vst.msk [vmem:[#allocation7] sm:$0x1] %vm193, %v169
    %195 = vst.msk [vmem:[#allocation7 + $0x1] sm:$0x1] %vm193, %v191
    // Predicated region
    $region30: #{tpu_custom_call.1} parent=1 // pred_check
      _
    $region31: #{tpu_custom_call.1} parent=1 // pred_check_branch
      %197 = sbr.rel (0) target = $region33
    $region32: #{tpu_custom_call.1} parent=1 // pred_region
      %199 = vsyncadd [#allocation4], 0
      %s200 = sshll.u32 [#allocation7], 4
      %s201 = int_to_ptr.vmem [resolvable:$true] %s200
      %s202 = sshll.u32 %s5, 4
      %s203 = int_to_ptr.hbm [resolvable:$true] %s202
      %208 = dma.vmem_to_hbm [thread:$0]  %s201, 32, %s203, [#allocation4], 16, 16, 1
    $region33: #{tpu_custom_call.1} parent=1 // pred_fallthru
      _
    // Predicated region
    $region34: #{tpu_custom_call.1} parent=1 // pred_check
      _
    $region35: #{tpu_custom_call.1} parent=1 // pred_check_branch
      %210 = sbr.rel (0) target = $region37
    $region36: #{tpu_custom_call.1} parent=1 // pred_region
      %212 = dma.done [#allocation4], 32
    $region37: #{tpu_custom_call.1} parent=1 // pred_fallthru
      _
    %213 = vsyncpa [#allocation3], 1
    %214 = vsyncpa [#allocation6], 1
    %215 = vsyncpa [#allocation4], 1

</llo_original>
